<compile_context>
chip_gen: v7x
topology: tpu7x:2x2x1
jax: 0.10.0
libtpu: 0.0.40
codegen_flags: <defaults>
</compile_context>

<pallas_src>
import jax
import jax.numpy as jnp
from jax.experimental import pallas as pl
from jax.experimental.pallas import tpu as pltpu

_EPS = 1e-5
_INV_SQRT2 = 0.7071067811865476


def _round_up(a, b):
    return (a + b - 1) // b * b


def _stats_kernel(x_ref, w_ref, s_ref):
    """Per-tile conv (single MXU dot, K = KH*KW*Cin) + per-channel partial sum / sum-of-squares.

    x_ref: (Kpad, TILE_M) bf16   im2col'd input, (K, M) layout
    w_ref: (Cout, Kpad)   bf16   folded filter bank
    s_ref: (1, Cout, 2)   f32    [sum, sum of squares] over this tile's positions
    """
    y = jnp.dot(w_ref[...], x_ref[...], preferred_element_type=jnp.float32)  # (Cout, TILE_M)
    s0 = jnp.sum(y, axis=1, keepdims=True)          # (Cout, 1)
    s1 = jnp.sum(y * y, axis=1, keepdims=True)      # (Cout, 1)
    s_ref[0] = jnp.concatenate([s0, s1], axis=1)    # (Cout, 2)


def _fused_conv_bn_gelu_kernel(x_ref, w_ref, scale_ref, shift_ref, o_ref):
    """Recompute conv, apply folded BN affine (one FMA) + exact GELU; lane-dense store."""
    y = jnp.dot(w_ref[...], x_ref[...], preferred_element_type=jnp.float32)  # (Cout, TILE_M)
    y = y * scale_ref[...] + shift_ref[...]
    o_ref[...] = 0.5 * y * (1.0 + jax.lax.erf(y * _INV_SQRT2))


def conv_block(x_nchw, w_oihw, bias, gamma, beta):
    """Pallas implementation of ConvBlock.forward.  x_nchw: (N, Cin, H, W) float32."""
    del bias  # training-mode BatchNorm cancels the conv bias exactly (shift invariance)

    N, Cin, H, W = x_nchw.shape
    Cout, _, KH, KW = w_oihw.shape
    Ho, Wo = H - KH + 1, W - KW + 1            # padding = 0
    M = N * Ho * Wo                            # number of output positions (BN count)
    K = KH * KW * Cin                          # folded contraction depth
    Kpad = _round_up(K, 16)                    # bf16 sublane-tile friendly (zero rows: exact)

    # Tile over M: lane-dense multiples of 128, full last tile, >=2 grid steps when possible
    # (v7x has 2 TensorCores), capped so VMEM stays small on every generation.
    TILE_M = max(128, min(2048, _round_up(pl.cdiv(M, 2), 128)))
    Mpad = _round_up(M, TILE_M)
    n_tiles = Mpad // TILE_M

    # --- glue: wrapper-side im2col in (K, M) layout (Cin is small), bf16 MXU operands ----------
    x_nhwc = jnp.transpose(x_nchw, (0, 2, 3, 1))                           # (N, H, W, Cin)
    taps = jnp.stack([x_nhwc[:, dh:dh + Ho, dw:dw + Wo, :]
                      for dh in range(KH) for dw in range(KW)], axis=0)    # (KH*KW, N, Ho, Wo, Cin)
    x_colT = jnp.transpose(taps, (0, 4, 1, 2, 3)).reshape(K, M)            # row = tap*Cin + ci
    x_colT = jnp.pad(x_colT, ((0, Kpad - K), (0, Mpad - M))).astype(jnp.bfloat16)

    # (Cout, Cin, KH, KW) -> (Cout, K) with matching K index = (dh*KW + dw)*Cin + ci.
    w_fold = jnp.transpose(w_oihw, (0, 2, 3, 1)).reshape(Cout, K)
    w_fold = jnp.pad(w_fold, ((0, 0), (0, Kpad - K))).astype(jnp.bfloat16)

    cparams = pltpu.CompilerParams(
        dimension_semantics=("parallel",),
        vmem_limit_bytes=32 * 1024 * 1024,
    )

    # --- phase 1: per-tile BN partial stats only (no conv output written to HBM) ----------------
    stats = pl.pallas_call(
        _stats_kernel,
        grid=(n_tiles,),
        in_specs=[
            pl.BlockSpec((Kpad, TILE_M), lambda i: (0, i)),
            pl.BlockSpec((Cout, Kpad), lambda i: (0, 0)),
        ],
        out_specs=pl.BlockSpec((1, Cout, 2), lambda i: (i, 0, 0)),
        out_shape=jax.ShapeDtypeStruct((n_tiles, Cout, 2), jnp.float32),
        compiler_params=cparams,
    )(x_colT, w_fold)

    # --- BN finalize (tiny O(Cout) math): fold affine into a single scale/shift -----------------
    # Padded M columns are exactly zero (no bias), so they contribute nothing; divide by true M.
    tot = jnp.sum(stats, axis=0)                       # (Cout, 2)
    mean = tot[:, 0] / M
    var = tot[:, 1] / M - mean * mean                  # biased variance (training-mode BN)
    inv_std = jax.lax.rsqrt(var + _EPS)
    g = gamma.astype(jnp.float32)
    scale = (g * inv_std).reshape(Cout, 1)
    shift = (beta.astype(jnp.float32) - mean * g * inv_std).reshape(Cout, 1)

    # --- phase 2: fused conv-recompute + BN-apply + GELU, lane-dense un-padded stores -----------
    out_cm = pl.pallas_call(
        _fused_conv_bn_gelu_kernel,
        grid=(n_tiles,),
        in_specs=[
            pl.BlockSpec((Kpad, TILE_M), lambda i: (0, i)),
            pl.BlockSpec((Cout, Kpad), lambda i: (0, 0)),
            pl.BlockSpec((Cout, 1), lambda i: (0, 0)),
            pl.BlockSpec((Cout, 1), lambda i: (0, 0)),
        ],
        out_specs=pl.BlockSpec((Cout, TILE_M), lambda i: (0, i)),
        out_shape=jax.ShapeDtypeStruct((Cout, Mpad), jnp.float32),
        compiler_params=cparams,
    )(x_colT, w_fold, scale, shift)

    # --- glue: drop padded columns, back to NCHW -------------------------------------------------
    out = out_cm[:, :M].reshape(Cout, N, Ho, Wo)
    return jnp.transpose(out, (1, 0, 2, 3)).astype(x_nchw.dtype)


def _reference(x_nchw, w_oihw, bias, gamma, beta):
    """Pure-JAX f32 reference matching PyTorch semantics (training-mode BN, exact GELU)."""
    y = jax.lax.conv_general_dilated(
        x_nchw, w_oihw, window_strides=(1, 1), padding="VALID",
        dimension_numbers=("NCHW", "OIHW", "NCHW"),
    ) + bias.reshape(1, -1, 1, 1)
    mean = jnp.mean(y, axis=(0, 2, 3), keepdims=True)
    var = jnp.mean((y - mean) ** 2, axis=(0, 2, 3), keepdims=True)
    y = (y - mean) * jax.lax.rsqrt(var + _EPS)
    y = y * gamma.reshape(1, -1, 1, 1) + beta.reshape(1, -1, 1, 1)
    return 0.5 * y * (1.0 + jax.lax.erf(y * _INV_SQRT2))


if __name__ == "__main__":
    key = jax.random.PRNGKey(0)
    kx, kw, kb, kg, kbt = jax.random.split(key, 5)

    N, Cin, H, W = 2, 4, 16, 16
    Cout, KH, KW = 8, 3, 3

    x = jax.random.normal(kx, (N, Cin, H, W), jnp.float32)
    w = 0.1 * jax.random.normal(kw, (Cout, Cin, KH, KW), jnp.float32)
    b = 0.1 * jax.random.normal(kb, (Cout,), jnp.float32)
    gamma = 1.0 + 0.1 * jax.random.normal(kg, (Cout,), jnp.float32)
    beta = 0.1 * jax.random.normal(kbt, (Cout,), jnp.float32)

    out = jax.block_until_ready(conv_block(x, w, b, gamma, beta))
    assert out.shape == (N, Cout, H - KH + 1, W - KW + 1), out.shape

    ref = jax.block_until_ready(_reference(x, w, b, gamma, beta))
    # bf16 MXU operands (f32 accumulation) -> relaxed tolerance vs. the f32 reference.
    assert jnp.allclose(out, ref, atol=3e-2, rtol=3e-2), float(jnp.max(jnp.abs(out - ref)))

    print("KERNEL_OK")
</pallas_src>

<mosaic_0001>
module attributes {stable_mosaic.version = 11 : i64} {
  func.func @_stats_kernel(%arg0: i32, %arg1: memref<48x256xbf16, #tpu.memory_space<vmem>>, %arg2: memref<8x48xbf16, #tpu.memory_space<vmem>>, %arg3: memref<1x8x2xf32, #tpu.memory_space<vmem>>) attributes {dimension_semantics = [#tpu.dimension_semantics<parallel>], iteration_bounds = array<i64: 2>, scalar_prefetch = 0 : i64, scratch_operands = 0 : i64, tpu.core_type = #tpu.core_type<tc>, window_params = [{transform_indices = @transform_0, window_bounds = array<i64: 48, 256>}, {pipeline_mode = #tpu.pipeline_mode<synchronous>, transform_indices = @transform_1, window_bounds = array<i64: 8, 48>}, {transform_indices = @transform_2, window_bounds = array<i64: 1, 8, 2>}]} {
    %c0 = arith.constant 0 : index
    %c0_0 = arith.constant 0 : index
    %0 = vector.load %arg2[%c0, %c0_0] : memref<8x48xbf16, #tpu.memory_space<vmem>>, vector<8x48xbf16>
    %c0_1 = arith.constant 0 : index
    %c0_2 = arith.constant 0 : index
    %1 = vector.load %arg1[%c0_1, %c0_2] : memref<48x256xbf16, #tpu.memory_space<vmem>>, vector<48x256xbf16>
    %cst = arith.constant dense<0.000000e+00> : vector<8x256xf32>
    %2 = tpu.matmul %0, %1, %cst {dimension_numbers = #tpu.dot_dimension_numbers<[1], [0], [0], [1], [0, 0, 1, 1], [], []>} : vector<8x48xbf16>, vector<48x256xbf16>, vector<8x256xf32> -> vector<8x256xf32>
    %cst_3 = arith.constant dense<0.000000e+00> : vector<8xf32>
    %3 = vector.multi_reduction <add>, %2, %cst_3 [1] : vector<8x256xf32> to vector<8xf32>
    %4 = vector.shape_cast %3 : vector<8xf32> to vector<8x1xf32>
    %5 = arith.mulf %2, %2 : vector<8x256xf32>
    %cst_4 = arith.constant dense<0.000000e+00> : vector<8xf32>
    %6 = vector.multi_reduction <add>, %5, %cst_4 [1] : vector<8x256xf32> to vector<8xf32>
    %7 = vector.shape_cast %6 : vector<8xf32> to vector<8x1xf32>
    %8 = tpu.concatenate %4, %7 in 1 : vector<8x1xf32>, vector<8x1xf32> -> vector<8x2xf32>
    %c0_5 = arith.constant 0 : index
    %c0_6 = arith.constant 0 : index
    %c0_7 = arith.constant 0 : index
    %9 = vector.load %arg3[%c0_5, %c0_6, %c0_7] : memref<1x8x2xf32, #tpu.memory_space<vmem>>, vector<1x8x2xf32>
    %10 = vector.shape_cast %9 : vector<1x8x2xf32> to vector<8x2xf32>
    %11 = vector.shape_cast %8 : vector<8x2xf32> to vector<1x8x2xf32>
    tpu.vector_store %arg3[%c0_5, %c0_6, %c0_7], %11 {strides = array<i32>} : memref<1x8x2xf32, #tpu.memory_space<vmem>>, vector<1x8x2xf32>,
    return
  }
  func.func @transform_0(%arg0: i32) -> (i32, i32) {
    %c0_i32 = arith.constant 0 : i32
    %c0_i32_0 = arith.constant 0 : i32
    return %c0_i32, %arg0 : i32, i32
  }
  func.func @transform_1(%arg0: i32) -> (i32, i32) {
    %c0_i32 = arith.constant 0 : i32
    %c0_i32_0 = arith.constant 0 : i32
    %c0_i32_1 = arith.constant 0 : i32
    return %c0_i32, %c0_i32_0 : i32, i32
  }
  func.func @transform_2(%arg0: i32) -> (i32, i32, i32) {
    %c0_i32 = arith.constant 0 : i32
    %c0_i32_0 = arith.constant 0 : i32
    %c0_i32_1 = arith.constant 0 : i32
    return %arg0, %c0_i32, %c0_i32_0 : i32, i32, i32
  }
}

</mosaic_0001>

<llo_original>
// kernel: tpu_custom_call.1
$region0: #{tpu_custom_call.1}
  #allocation0 [shape = 'u32[]', space=smem, size = 0x4, offset = 0x4, fixed_abs, tag = 'smem constant byte address 0x4 - core index']
  #allocation1 [shape = 'u32[144,128]{1,0:T(1,128)}', space=vmem, size = 0x12000, scoped, tag = 'internal scratch']
  %s0 = inlined_call_operand.hbm [shape: bf16[48,512], index: 0, kind: input, shape index: {}]
  %s1 = inlined_call_operand.hbm [shape: bf16[8,48], index: 1, kind: input, shape index: {}]
  %s2 = inlined_call_operand.vmem [shape: f32[2,8,2], index: 2, kind: output, shape index: {}]
  %s3 = sld [smem:[#allocation0]]
  $region49: #{tpu_custom_call.1} parent=0
    _
  %s5 = ssub.s32 1, %s3
  %s6 = scalar_select 0, %s5, %s3
  $region1: #{tpu_custom_call.1} parent=0
    #allocation2 [shape = 'u8[49152]{0}', space=vmem, size = 0xc000, scoped, tag = 'input window, operand 0']
    #allocation3 [shape = 's32[2]{0}', space=sflag, size = 0x8, scoped, tag = 'scoped memory for tpu_custom_call.1']
    #allocation4 [shape = 'u8[2048]{0}', space=vmem, size = 0x800, scoped, tag = 'input window, operand 1, single buffered']
    #allocation5 [shape = 's32[1]{0}', space=sflag, size = 0x4, scoped, tag = 'scoped memory for tpu_custom_call.1']
    %7 = vsyncpa [#allocation3], 0
    %s8 = scalar_lea.sflag [#allocation3], 1
    %9 = vsyncpa %s8, 0
    %10 = vsyncpa [#allocation5], 0
    loop: start=0, step=1, limit=4
    $region2: #{tpu_custom_call.1} parent=1 // loop_pre_header
      _
    $region3: #{tpu_custom_call.1} parent=1 // loop_header
      %s12 = sphi 0, %s16
      %p13 = scmp.ge.s32.totalorder %s12, 4
      %s22 = sphi 0, %s24
      %s25 = sphi 0, %s22
      %s26 = sphi 0, %s25
      %s42 = sphi 0, %s26
      %s46 = sphi 0, %s46
      %s48 = sphi 0, %s46
      %s49 = sphi 0, %s48
      %s63 = sphi 0, %s49
      %s69 = sphi 0, %s71
      %s72 = sphi 0, %s69
      %s73 = sphi 0, %s72
      %s89 = sphi 0, %s73
    $region4: #{tpu_custom_call.1} parent=1 // loop_header_branch
      %15 = sbr.rel (%p13) target = $region8
    $region5: #{tpu_custom_call.1} parent=1 // loop_body
      %s17 = ssub.s32 %s12, 1
      %s18 = ssub.s32 %s12, 2
      %s19 = sadd.s32 %s12, 1
      %s20 = ssub.s32 %s12, %s19
      %p21 = scmp.eq.s32.totalorder %s20, 0
      %s23 = sadd.s32 %s22, 1
      %s24 = scalar_select %p21, %s22, %s23
      %p27 = pneg %p21
      %p28 = scmp.eq.s32.totalorder %s12, 1
      %p29 = por %p27, %p28
      %p30 = scmp.ne.s32.totalorder %s22, %s25
      %p31 = scmp.eq.s32.totalorder %s12, 0
      %p32 = por %p30, %p31
      %p33 = scmp.ne.s32.totalorder %s22, %s25
      %p34 = scmp.eq.s32.totalorder %s17, 1
      %p35 = por %p33, %p34
      %p36 = scmp.ne.s32.totalorder %s25, %s26
      %p37 = scmp.eq.s32.totalorder %s17, 0
      %p38 = por %p36, %p37
      %p39 = scmp.ne.s32.totalorder %s25, %s26
      %p40 = scmp.eq.s32.totalorder %s18, 1
      %p41 = por %p39, %p40
      %p43 = scmp.ne.s32.totalorder %s26, %s42
      %p44 = scmp.eq.s32.totalorder %s18, 0
      %p45 = por %p43, %p44
      %s47 = sadd.s32 %s46, 1
      %p50 = scmp.eq.s32.totalorder %s12, 1
      %p51 = scmp.ne.s32.totalorder %s46, %s48
      %p52 = scmp.eq.s32.totalorder %s12, 0
      %p53 = por %p51, %p52
      %p54 = scmp.ne.s32.totalorder %s46, %s48
      %p55 = scmp.eq.s32.totalorder %s17, 1
      %p56 = por %p54, %p55
      %p57 = scmp.ne.s32.totalorder %s48, %s49
      %p58 = scmp.eq.s32.totalorder %s17, 0
      %p59 = por %p57, %p58
      %p60 = scmp.ne.s32.totalorder %s48, %s49
      %p61 = scmp.eq.s32.totalorder %s18, 1
      %p62 = por %p60, %p61
      %p64 = scmp.ne.s32.totalorder %s49, %s63
      %p65 = scmp.eq.s32.totalorder %s18, 0
      %p66 = por %p64, %p65
      %s67 = ssub.s32 %s12, %s19
      %p68 = scmp.eq.s32.totalorder %s67, 0
      %s70 = sadd.s32 %s69, 1
      %s71 = scalar_select %p68, %s69, %s70
      %p74 = pneg %p68
      %p75 = scmp.eq.s32.totalorder %s12, 1
      %p76 = por %p74, %p75
      %p77 = scmp.ne.s32.totalorder %s69, %s72
      %p78 = scmp.eq.s32.totalorder %s12, 0
      %p79 = por %p77, %p78
      %p80 = scmp.ne.s32.totalorder %s69, %s72
      %p81 = scmp.eq.s32.totalorder %s17, 1
      %p82 = por %p80, %p81
      %p83 = scmp.ne.s32.totalorder %s72, %s73
      %p84 = scmp.eq.s32.totalorder %s17, 0
      %p85 = por %p83, %p84
      %p86 = scmp.ne.s32.totalorder %s72, %s73
      %p87 = scmp.eq.s32.totalorder %s18, 1
      %p88 = por %p86, %p87
      %p90 = scmp.ne.s32.totalorder %s73, %s89
      %p91 = scmp.eq.s32.totalorder %s18, 0
      %p92 = por %p90, %p91
      %p93 = scmp.le.s32.totalorder 1, %s12
      %p94 = scmp.lt.s32.totalorder %s12, 3
      %p95 = pnand %p93, %p94
      %p96 = pneg %p95
      // Predicated region
      $region9: #{tpu_custom_call.1} parent=5 // pred_check
        _
      $region10: #{tpu_custom_call.1} parent=5 // pred_check_branch
        %98 = sbr.rel (%p95) target = $region12
      $region11: #{tpu_custom_call.1} parent=5 // pred_region
        %s99 = ssub.s32 %s12, 1
        // Predicated region
        $region13: #{tpu_custom_call.1} parent=11 // pred_check
          %p100 = pneg %p59
        $region14: #{tpu_custom_call.1} parent=11 // pred_check_branch
          %102 = sbr.rel (%p100) target = $region16
        $region15: #{tpu_custom_call.1} parent=11 // pred_region
          %s104 = ssub.s32 64, 64
          %105 = vsyncadd [#allocation5], %s104
          %s107 = sshll.u32 [#allocation4], 4
          %s108 = int_to_ptr.vmem [resolvable:$true] %s107
          %110 = dma.hbm_to_vmem [thread:$0]  %s1, 64, %s108, [#allocation5]
        $region16: #{tpu_custom_call.1} parent=11 // pred_fallthru
          _
      $region12: #{tpu_custom_call.1} parent=5 // pred_fallthru
        _
      %p111 = scmp.lt.s32.totalorder %s12, 2
      // Predicated region
      $region17: #{tpu_custom_call.1} parent=5 // pred_check
        %p112 = pneg %p111
      $region18: #{tpu_custom_call.1} parent=5 // pred_check_branch
        %114 = sbr.rel (%p112) target = $region20
      $region19: #{tpu_custom_call.1} parent=5 // pred_region
        // Predicated region
        $region21: #{tpu_custom_call.1} parent=19 // pred_check
          %p115 = pneg %p32
        $region22: #{tpu_custom_call.1} parent=19 // pred_check_branch
          %117 = sbr.rel (%p115) target = $region24
        $region23: #{tpu_custom_call.1} parent=19 // pred_region
          %s118 = sand.u32 %s22, 1
          %s119 = scalar_lea.sflag [#allocation3], %s118
          %s120 = sand.u32 %s22, 1
          %s121 = smul.addr %s120, 48
          %s122 = scalar_lea.vmem [#allocation2], %s121
          %s123 = smul.u32 2, %s12
          %s125 = ssub.s32 768, 768
          %126 = vsyncadd %s119, %s125
          %s127 = smul.addr %s123, 64
          %s128 = scalar_lea.hbm %s0, %s127
          %s129 = sshll.u32 %s122, 4
          %s130 = int_to_ptr.vmem [resolvable:$true] %s129
          %135 = dma.hbm_to_vmem [thread:$0]  %s128, 768, %s130, %s119, 256, 128, 8
        $region24: #{tpu_custom_call.1} parent=19 // pred_fallthru
          _
      $region20: #{tpu_custom_call.1} parent=5 // pred_fallthru
        _
      %p136 = scmp.le.s32.totalorder 1, %s12
      %p137 = scmp.lt.s32.totalorder %s12, 3
      %p138 = pnand %p136, %p137
      %p139 = pneg %p138
      // Predicated region
      $region25: #{tpu_custom_call.1} parent=5 // pred_check
        _
      $region26: #{tpu_custom_call.1} parent=5 // pred_check_branch
        %141 = sbr.rel (%p138) target = $region28
      $region27: #{tpu_custom_call.1} parent=5 // pred_region
        %s142 = ssub.s32 %s12, 1
        %s143 = sand.u32 %s25, 1
        %s144 = scalar_lea.sflag [#allocation3], %s143
        %s145 = sand.u32 %s25, 1
        %s146 = smul.addr %s145, 48
        %s147 = scalar_lea.vmem [#allocation2], %s146
        // Predicated region
        $region29: #{tpu_custom_call.1} parent=27 // pred_check
          %p148 = pneg %p38
        $region30: #{tpu_custom_call.1} parent=27 // pred_check_branch
          %150 = sbr.rel (%p148) target = $region32
        $region31: #{tpu_custom_call.1} parent=27 // pred_region
          %151 = dma.done %s144, 768
        $region32: #{tpu_custom_call.1} parent=27 // pred_fallthru
          _
        // Predicated region
        $region33: #{tpu_custom_call.1} parent=27 // pred_check
          %p152 = pneg %p59
        $region34: #{tpu_custom_call.1} parent=27 // pred_check_branch
          %154 = sbr.rel (%p152) target = $region36
        $region35: #{tpu_custom_call.1} parent=27 // pred_region
          %155 = dma.done [#allocation5], 64
        $region36: #{tpu_custom_call.1} parent=27 // pred_fallthru
          _
        %s156 = sand.u32 %s25, 1
        %s157 = scalar_lea.sflag [#allocation3], %s156
        %s158 = sand.u32 %s25, 1
        %s159 = smul.addr %s158, 48
        %s160 = scalar_lea.vmem [#allocation2], %s159
        %p161 = pneg %p38
        %p162 = pneg %p35
        %p163 = pneg %p59
        %p164 = pneg %p56
        %p165 = pneg %p85
        %p166 = pneg %p82
        %p167 = scmp.lt.s32.totalorder %s17, 1
        %s168 = scalar_select %p167, %s17, 1
        %s169 = smul.addr %s168, 8
        %s170 = scalar_lea.vmem %s2, %s169
        %s171 = smul.u32 2, %s17
        %p172 = scmp.lt.s32.totalorder %s17, 1
        %s173 = scalar_select %p172, %s17, 1
        %s174 = smul.addr %s173, 8
        %s175 = scalar_lea.vmem %s2, %s174
        %v177 = vld [vmem:[#allocation4] sm:$0xf]
        %v178 = vld [vmem:[%s147] sm:$0xff]
        %v179 = vld [vmem:[%s147 + $0x8] sm:$0xff]
        %v180 = vld [vmem:[%s147 + $0x10] sm:$0xff]
        %v181 = vld [vmem:[%s147 + $0x18] sm:$0xff]
        %v182 = vld [vmem:[%s147 + $0x20] sm:$0xff]
        %v183 = vld [vmem:[%s147 + $0x28] sm:$0xff]
        %v190 = vunpack.c.l.b16 %v178
        %v191 = vunpack.c.h.b16 %v178
        %v192 = vunpack.c.l.b16 %v179
        %v193 = vunpack.c.h.b16 %v179
        %v194 = vunpack.c.l.b16 %v180
        %v195 = vunpack.c.h.b16 %v180
        %v196 = vunpack.c.l.b16 %v181
        %v197 = vunpack.c.h.b16 %v181
        %v198 = vunpack.c.l.b16 %v182
        %v199 = vunpack.c.h.b16 %v182
        %v200 = vunpack.c.l.b16 %v183
        %v201 = vunpack.c.h.b16 %v183
        %v202 = vpack.c.b16 %v192, %v190
        %v203 = vpack.c.b16 %v193, %v191
        %v204 = vpack.c.b16 %v196, %v194
        %v205 = vpack.c.b16 %v197, %v195
        %v206 = vpack.c.b16 %v200, %v198
        %v207 = vpack.c.b16 %v201, %v199
        %vm214 = vcmask 392192
        %v216 = vsel %vm214, %v177, 0
        %218 = vmatprep.subr.bf16.mxu0 %v203
        %219 = vmatpush1.bf16.msra.mxu0 %v202
        %220 = vmatprep.subr.bf16.mxu0 %v205
        %221 = vmatpush1.bf16.msra.mxu0 %v204
        %222 = vmatprep.subr.bf16.mxu0 %v207
        %223 = vmatpush1.bf16.msra.mxu0 %v206
        %224 = vmatprep.subr.bf16.mxu0 0
        %225 = vmatpush1.bf16.msra.mxu0 0
        %226 = vmatprep.subr.bf16.mxu0 0
        %227 = vmatpush1.bf16.msra.mxu0 0
        %228 = vmatprep.subr.bf16.mxu0 0
        %229 = vmatpush1.bf16.msra.mxu0 0
        %230 = vmatprep.subr.bf16.mxu0 0
        %231 = vmatpush1.bf16.msra.mxu0 0
        %232 = vmatprep.subr.bf16.mxu0 0
        %233 = vmatpush1.bf16.msra.mxu0 0
        %234 = vmatprep.subr.bf16.mxu0 0
        %235 = vmatpush1.bf16.msra.mxu0 0
        %236 = vmatprep.subr.bf16.mxu0 0
        %237 = vmatpush1.bf16.msra.mxu0 0
        %238 = vmatprep.subr.bf16.mxu0 0
        %239 = vmatpush1.bf16.msra.mxu0 0
        %240 = vmatprep.subr.bf16.mxu0 0
        %241 = vmatpush1.bf16.msra.mxu0 0
        %242 = vmatprep.subr.bf16.mxu0 0
        %243 = vmatpush1.bf16.msra.mxu0 0
        %244 = vmatprep.subr.bf16.mxu0 0
        %245 = vmatpush1.bf16.msra.mxu0 0
        %246 = vmatprep.subr.bf16.mxu0 0
        %247 = vmatpush1.bf16.msra.mxu0 0
        %248 = vmatprep.subr.bf16.mxu0 0
        %249 = vmatpush1.bf16.msra.mxu0 0
        %250 = vmatprep.mubr.bf16.mxu0 0
        %251 = vmatmul.mubr.bf16.gmra.mrb[0].mxu0 %v216
        %v252 = vpop.f32.mrb[0].mxu0
        %v253 = vadd.f32 0.0, %v252
        %v254 = vpop.f32.mrb[0].mxu0
        %v255 = vadd.f32 0.0, %v254
        %v256 = vpop.f32.mrb[0].mxu0
        %v257 = vpop.f32.mrb[0].mxu0
        %258 = vdwg.mxu0
        %v259 = vadd.f32 %v253, %v255
        %260 = vadd.xlane.f32.xlu0 %v259
        %v261 = vpop.xlane.xlu0 %260
        %v262 = vmul.f32 %v253, %v253
        %v263 = vmul.f32 %v255, %v255
        %v264 = vadd.f32 %v262, %v263
        %265 = vadd.xlane.f32.xlu0 %v264
        %v266 = vpop.xlane.xlu0 %265
        %vm267 = vcmask 7168
        %v268 = vsel %vm267, %v261, %v266
        %vm269 = vcmask 15360
        %270 = vst.msk [vmem:[%s175] sm:$0xff] %vm269, %v268
        %p271 = scmp.lt.s32.totalorder %s17, 1
        %s272 = scalar_select %p271, %s17, 1
        %s273 = smul.addr %s272, 8
        %s274 = scalar_lea.vmem %s2, %s273
        // Predicated region
        $region37: #{tpu_custom_call.1} parent=27 // pred_check
          %p275 = pneg %p82
        $region38: #{tpu_custom_call.1} parent=27 // pred_check_branch
          %277 = sbr.rel (%p275) target = $region40
        $region39: #{tpu_custom_call.1} parent=27 // pred_region
          _
        $region40: #{tpu_custom_call.1} parent=27 // pred_fallthru
          _
      $region28: #{tpu_custom_call.1} parent=5 // pred_fallthru
        _
      %p278 = scmp.le.s32.totalorder 2, %s12
      // Predicated region
      $region41: #{tpu_custom_call.1} parent=5 // pred_check
        %p279 = pneg %p278
      $region42: #{tpu_custom_call.1} parent=5 // pred_check_branch
        %281 = sbr.rel (%p279) target = $region44
      $region43: #{tpu_custom_call.1} parent=5 // pred_region
        %s282 = ssub.s32 %s12, 2
        // Predicated region
        $region45: #{tpu_custom_call.1} parent=43 // pred_check
          %p283 = pneg %p88
        $region46: #{tpu_custom_call.1} parent=43 // pred_check_branch
          %285 = sbr.rel (%p283) target = $region48
        $region47: #{tpu_custom_call.1} parent=43 // pred_region
          %p286 = scmp.lt.s32.totalorder %s18, 1
          %s287 = scalar_select %p286, %s18, 1
          %s288 = smul.addr %s287, 8
          %s289 = scalar_lea.vmem %s2, %s288
        $region48: #{tpu_custom_call.1} parent=43 // pred_fallthru
          _
      $region44: #{tpu_custom_call.1} parent=5 // pred_fallthru
        _
    $region6: #{tpu_custom_call.1} parent=1 // loop_footer
      %s16 = sadd.s32 1, %s12
    $region7: #{tpu_custom_call.1} parent=1 // loop_footer_branch
      %11 = sbr.rel target = $region3
    $region8: #{tpu_custom_call.1} parent=1 // loop_exit
      _
    %290 = vsyncpa [#allocation3], 1
    %s291 = scalar_lea.sflag [#allocation3], 1
    %292 = vsyncpa %s291, 1
    %293 = vsyncpa [#allocation5], 1

</llo_original>
